<compile_context>
chip_gen: v5e
topology: v5e:2x2
jax: 0.10.0
libtpu: 0.0.40
codegen_flags: <defaults>
</compile_context>

<pallas_src>
import functools

import jax
import jax.numpy as jnp
from jax import lax
from jax.experimental import pallas as pl
from jax.experimental.pallas import tpu as pltpu


def _round_up(v, m):
    return ((v + m - 1) // m) * m


def _gcw_kernel(w_ref, b_ref, x_ref, o_ref, patch_ref, *,
                KH, KW, W_pad, C_rows, P):
    # w_ref:     (M_pad, K_pat)  bf16 VMEM -- block-sparse im2col weights
    # b_ref:     (M_pad, 1)      f32  VMEM -- bias per output channel (pad rows 0)
    # x_ref:     (1, C_rows, L)  bf16 VMEM -- one padded, spatially-flattened sample
    # o_ref:     (1, M_pad, P)        VMEM -- lane-dense output slab
    # patch_ref: (K_pat, P)      bf16 VMEM scratch -- im2col patch matrix

    # Build the im2col patch: KH*KW full-tile (C_rows, P) copies of the whole
    # channel block, each lane-shifted by (kh, kw) (shift work goes to XLU).
    # Every row of patch_ref is written each step -> no scratch init needed.
    for kh in range(KH):
        for kw in range(KW):
            s = kh * W_pad + kw
            r = (kh * KW + kw) * C_rows
            patch_ref[r:r + C_rows, :] = x_ref[0, :, s:s + P]

    # One MXU matmul for all groups and output depths; f32 accumulation.
    res = jnp.dot(w_ref[...], patch_ref[...],
                  preferred_element_type=jnp.float32)
    res = jnp.maximum(res + b_ref[...], 0.0)          # fused bias + ReLU (f32)
    o_ref[0, :, :] = res.astype(o_ref.dtype)          # single aligned full store


def gcw_conv(x, weight, bias, *, groups, kernel_size, padding):
    """Pallas implementation of GCWConv.forward (x: NCHW)."""
    N, C, H, W = x.shape
    KD, KH, KW = kernel_size
    PD, PH, PW = padding
    G = groups

    D_out = (C + 2 * PD - KD) // G + 1
    H_out = H + 2 * PH - KH + 1
    W_out = W + 2 * PW - KW + 1
    C_pad, H_pad, W_pad = C + 2 * PD, H + 2 * PH, W + 2 * PW

    M = G * D_out                          # output channels, (g, d) order
    M_pad = _round_up(M, 8)                # f32 output sublane tile
    C_rows = _round_up(C_pad, 16)          # bf16 patch sublane tile
    K_pat = KH * KW * C_rows               # im2col contraction length

    P = _round_up(H_out * W_pad, 128)      # lane-dense compute width
    s_max = (KH - 1) * W_pad + (KW - 1)    # largest in-kernel lane shift
    L = _round_up(s_max + P, 128)          # padded flattened-input length

    # ---- wrapper-side layout: pad, flatten spatial into lanes, cast bf16 ----
    x_p = jnp.pad(x, ((0, 0), (PD, PD), (PH, PH), (PW, PW)))
    x_flat = x_p.reshape(N, C_pad, H_pad * W_pad)
    x_flat = jnp.pad(x_flat, ((0, 0), (0, C_rows - C_pad),
                              (0, L - H_pad * W_pad)))
    x_flat = x_flat.astype(jnp.bfloat16)

    # ---- block-sparse im2col weight matrix, rows already in (g, d) order ----
    # w_big[g*D_out + d, (kh*KW + kw)*C_rows + (d*G + kd)] = weight[g,0,kd,kh,kw]
    w0 = jnp.transpose(weight[:, 0].astype(jnp.float32), (0, 2, 3, 1))  # (G,KH,KW,KD)
    blocks = []
    for d in range(D_out):                 # D_out is small -> static loop
        blk = jnp.zeros((G, KH, KW, C_rows), jnp.float32)
        blk = blk.at[:, :, :, d * G:d * G + KD].set(w0)
        blocks.append(blk)
    w_big = jnp.stack(blocks, axis=1).reshape(M, K_pat)
    w_big = jnp.pad(w_big, ((0, M_pad - M), (0, 0))).astype(jnp.bfloat16)

    b_col = jnp.repeat(bias.astype(jnp.float32), D_out).reshape(M, 1)
    b_col = jnp.pad(b_col, ((0, M_pad - M), (0, 0)))

    kernel = functools.partial(_gcw_kernel, KH=KH, KW=KW, W_pad=W_pad,
                               C_rows=C_rows, P=P)

    cost = pl.CostEstimate(
        flops=2 * N * M_pad * K_pat * P,
        transcendentals=0,
        bytes_accessed=(x_flat.size * 2 + w_big.size * 2 + b_col.size * 4
                        + N * M_pad * P * x.dtype.itemsize))

    out_k = pl.pallas_call(
        kernel,
        out_shape=jax.ShapeDtypeStruct((N, M_pad, P), x.dtype),
        grid=(N,),
        in_specs=[
            pl.BlockSpec((M_pad, K_pat), lambda n: (0, 0)),     # weights (MXU lhs)
            pl.BlockSpec((M_pad, 1), lambda n: (0, 0)),         # bias column
            pl.BlockSpec((1, C_rows, L), lambda n: (n, 0, 0)),  # one sample
        ],
        out_specs=pl.BlockSpec((1, M_pad, P), lambda n: (n, 0, 0)),
        scratch_shapes=[pltpu.VMEM((K_pat, P), jnp.bfloat16)],  # im2col patch
        compiler_params=pltpu.CompilerParams(
            dimension_semantics=("parallel",)),
        cost_estimate=cost,
    )(w_big, b_col, x_flat)

    # ---- wrapper-side layout: crop pad rows / lanes, un-flatten, crop W pad ----
    out = out_k[:, :M, :H_out * W_pad].reshape(N, M, H_out, W_pad)
    return out[..., :W_out]


def gcw_conv_ref(x, weight, bias, *, groups, kernel_size, padding):
    """Pure-JAX reference matching the PyTorch module exactly."""
    xi = x[:, None]  # (N, 1, C, H, W)
    out = lax.conv_general_dilated(
        xi, weight,
        window_strides=(groups, 1, 1),
        padding=[(padding[0], padding[0]),
                 (padding[1], padding[1]),
                 (padding[2], padding[2])],
        dimension_numbers=("NCDHW", "OIDHW", "NCDHW"))
    out = out + bias[None, :, None, None, None]
    out = out.reshape(out.shape[0], -1, out.shape[3], out.shape[4])
    return jnp.maximum(out, 0.0)


if __name__ == "__main__":
    key = jax.random.PRNGKey(0)
    k1, k2, k3 = jax.random.split(key, 3)

    # Small shapes consistent with the module: x is NCHW.
    N, C, H, W = 2, 4, 16, 16
    groups = 2
    kernel_size = (3, 3, 3)
    padding = (1, 1, 1)

    # Round test data to bf16-representable values so the check is insensitive
    # to the kernel's bf16 MXU operands (accumulation stays f32).
    x = jax.random.normal(k1, (N, C, H, W), jnp.float32)
    x = x.astype(jnp.bfloat16).astype(jnp.float32)
    weight = jax.random.normal(k2, (groups, 1) + kernel_size, jnp.float32) * 0.1
    weight = weight.astype(jnp.bfloat16).astype(jnp.float32)
    bias = jax.random.normal(k3, (groups,), jnp.float32) * 0.1
    bias = bias.astype(jnp.bfloat16).astype(jnp.float32)

    out = gcw_conv(x, weight, bias, groups=groups,
                   kernel_size=kernel_size, padding=padding)
    out = jax.block_until_ready(out)

    ref = gcw_conv_ref(x, weight, bias, groups=groups,
                       kernel_size=kernel_size, padding=padding)
    assert out.shape == ref.shape, (out.shape, ref.shape)
    max_err = float(jnp.max(jnp.abs(out - ref)))
    assert jnp.allclose(out, ref, atol=1e-3, rtol=1e-3), max_err
    print("KERNEL_OK")
</pallas_src>

<mosaic_0001>
module attributes {stable_mosaic.version = 11 : i64} {
  func.func @_gcw_kernel(%arg0: i32, %arg1: memref<8x144xbf16, #tpu.memory_space<vmem>>, %arg2: memref<8x1xf32, #tpu.memory_space<vmem>>, %arg3: memref<1x16x512xbf16, #tpu.memory_space<vmem>>, %arg4: memref<1x8x384xf32, #tpu.memory_space<vmem>>, %arg5: memref<144x384xbf16, #tpu.memory_space<vmem>>) attributes {dimension_semantics = [#tpu.dimension_semantics<parallel>], iteration_bounds = array<i64: 2>, scalar_prefetch = 0 : i64, scratch_operands = 1 : i64, tpu.core_type = #tpu.core_type<tc>, window_params = [{pipeline_mode = #tpu.pipeline_mode<synchronous>, transform_indices = @transform_0, window_bounds = array<i64: 8, 144>}, {pipeline_mode = #tpu.pipeline_mode<synchronous>, transform_indices = @transform_1, window_bounds = array<i64: 8, 1>}, {transform_indices = @transform_2, window_bounds = array<i64: 1, 16, 512>}, {transform_indices = @transform_3, window_bounds = array<i64: 1, 8, 384>}]} {
    %c0 = arith.constant 0 : index
    %c0_0 = arith.constant 0 : index
    %c0_1 = arith.constant 0 : index
    %0 = vector.load %arg3[%c0, %c0_0, %c0_1] : memref<1x16x512xbf16, #tpu.memory_space<vmem>>, vector<1x16x384xbf16>
    %1 = vector.shape_cast %0 : vector<1x16x384xbf16> to vector<16x384xbf16>
    %c0_2 = arith.constant 0 : index
    %c0_3 = arith.constant 0 : index
    %2 = vector.load %arg5[%c0_2, %c0_3] : memref<144x384xbf16, #tpu.memory_space<vmem>>, vector<16x384xbf16>
    tpu.vector_store %arg5[%c0_2, %c0_3], %1 {strides = array<i32>} : memref<144x384xbf16, #tpu.memory_space<vmem>>, vector<16x384xbf16>,
    %c0_4 = arith.constant 0 : index
    %c0_5 = arith.constant 0 : index
    %c1 = arith.constant 1 : index
    %3 = vector.load %arg3[%c0_4, %c0_5, %c1] : memref<1x16x512xbf16, #tpu.memory_space<vmem>>, vector<1x16x384xbf16>
    %4 = vector.shape_cast %3 : vector<1x16x384xbf16> to vector<16x384xbf16>
    %c16 = arith.constant 16 : index
    %c0_6 = arith.constant 0 : index
    %5 = vector.load %arg5[%c16, %c0_6] : memref<144x384xbf16, #tpu.memory_space<vmem>>, vector<16x384xbf16>
    tpu.vector_store %arg5[%c16, %c0_6], %4 {strides = array<i32>} : memref<144x384xbf16, #tpu.memory_space<vmem>>, vector<16x384xbf16>,
    %c0_7 = arith.constant 0 : index
    %c0_8 = arith.constant 0 : index
    %c2 = arith.constant 2 : index
    %6 = vector.load %arg3[%c0_7, %c0_8, %c2] : memref<1x16x512xbf16, #tpu.memory_space<vmem>>, vector<1x16x384xbf16>
    %7 = vector.shape_cast %6 : vector<1x16x384xbf16> to vector<16x384xbf16>
    %c32 = arith.constant 32 : index
    %c0_9 = arith.constant 0 : index
    %8 = vector.load %arg5[%c32, %c0_9] : memref<144x384xbf16, #tpu.memory_space<vmem>>, vector<16x384xbf16>
    tpu.vector_store %arg5[%c32, %c0_9], %7 {strides = array<i32>} : memref<144x384xbf16, #tpu.memory_space<vmem>>, vector<16x384xbf16>,
    %c0_10 = arith.constant 0 : index
    %c0_11 = arith.constant 0 : index
    %c18 = arith.constant 18 : index
    %9 = vector.load %arg3[%c0_10, %c0_11, %c18] : memref<1x16x512xbf16, #tpu.memory_space<vmem>>, vector<1x16x384xbf16>
    %10 = vector.shape_cast %9 : vector<1x16x384xbf16> to vector<16x384xbf16>
    %c48 = arith.constant 48 : index
    %c0_12 = arith.constant 0 : index
    %11 = vector.load %arg5[%c48, %c0_12] : memref<144x384xbf16, #tpu.memory_space<vmem>>, vector<16x384xbf16>
    tpu.vector_store %arg5[%c48, %c0_12], %10 {strides = array<i32>} : memref<144x384xbf16, #tpu.memory_space<vmem>>, vector<16x384xbf16>,
    %c0_13 = arith.constant 0 : index
    %c0_14 = arith.constant 0 : index
    %c19 = arith.constant 19 : index
    %12 = vector.load %arg3[%c0_13, %c0_14, %c19] : memref<1x16x512xbf16, #tpu.memory_space<vmem>>, vector<1x16x384xbf16>
    %13 = vector.shape_cast %12 : vector<1x16x384xbf16> to vector<16x384xbf16>
    %c64 = arith.constant 64 : index
    %c0_15 = arith.constant 0 : index
    %14 = vector.load %arg5[%c64, %c0_15] : memref<144x384xbf16, #tpu.memory_space<vmem>>, vector<16x384xbf16>
    tpu.vector_store %arg5[%c64, %c0_15], %13 {strides = array<i32>} : memref<144x384xbf16, #tpu.memory_space<vmem>>, vector<16x384xbf16>,
    %c0_16 = arith.constant 0 : index
    %c0_17 = arith.constant 0 : index
    %c20 = arith.constant 20 : index
    %15 = vector.load %arg3[%c0_16, %c0_17, %c20] : memref<1x16x512xbf16, #tpu.memory_space<vmem>>, vector<1x16x384xbf16>
    %16 = vector.shape_cast %15 : vector<1x16x384xbf16> to vector<16x384xbf16>
    %c80 = arith.constant 80 : index
    %c0_18 = arith.constant 0 : index
    %17 = vector.load %arg5[%c80, %c0_18] : memref<144x384xbf16, #tpu.memory_space<vmem>>, vector<16x384xbf16>
    tpu.vector_store %arg5[%c80, %c0_18], %16 {strides = array<i32>} : memref<144x384xbf16, #tpu.memory_space<vmem>>, vector<16x384xbf16>,
    %c0_19 = arith.constant 0 : index
    %c0_20 = arith.constant 0 : index
    %c36 = arith.constant 36 : index
    %18 = vector.load %arg3[%c0_19, %c0_20, %c36] : memref<1x16x512xbf16, #tpu.memory_space<vmem>>, vector<1x16x384xbf16>
    %19 = vector.shape_cast %18 : vector<1x16x384xbf16> to vector<16x384xbf16>
    %c96 = arith.constant 96 : index
    %c0_21 = arith.constant 0 : index
    %20 = vector.load %arg5[%c96, %c0_21] : memref<144x384xbf16, #tpu.memory_space<vmem>>, vector<16x384xbf16>
    tpu.vector_store %arg5[%c96, %c0_21], %19 {strides = array<i32>} : memref<144x384xbf16, #tpu.memory_space<vmem>>, vector<16x384xbf16>,
    %c0_22 = arith.constant 0 : index
    %c0_23 = arith.constant 0 : index
    %c37 = arith.constant 37 : index
    %21 = vector.load %arg3[%c0_22, %c0_23, %c37] : memref<1x16x512xbf16, #tpu.memory_space<vmem>>, vector<1x16x384xbf16>
    %22 = vector.shape_cast %21 : vector<1x16x384xbf16> to vector<16x384xbf16>
    %c112 = arith.constant 112 : index
    %c0_24 = arith.constant 0 : index
    %23 = vector.load %arg5[%c112, %c0_24] : memref<144x384xbf16, #tpu.memory_space<vmem>>, vector<16x384xbf16>
    tpu.vector_store %arg5[%c112, %c0_24], %22 {strides = array<i32>} : memref<144x384xbf16, #tpu.memory_space<vmem>>, vector<16x384xbf16>,
    %c0_25 = arith.constant 0 : index
    %c0_26 = arith.constant 0 : index
    %c38 = arith.constant 38 : index
    %24 = vector.load %arg3[%c0_25, %c0_26, %c38] : memref<1x16x512xbf16, #tpu.memory_space<vmem>>, vector<1x16x384xbf16>
    %25 = vector.shape_cast %24 : vector<1x16x384xbf16> to vector<16x384xbf16>
    %c128 = arith.constant 128 : index
    %c0_27 = arith.constant 0 : index
    %26 = vector.load %arg5[%c128, %c0_27] : memref<144x384xbf16, #tpu.memory_space<vmem>>, vector<16x384xbf16>
    tpu.vector_store %arg5[%c128, %c0_27], %25 {strides = array<i32>} : memref<144x384xbf16, #tpu.memory_space<vmem>>, vector<16x384xbf16>,
    %c0_28 = arith.constant 0 : index
    %c0_29 = arith.constant 0 : index
    %27 = vector.load %arg1[%c0_28, %c0_29] : memref<8x144xbf16, #tpu.memory_space<vmem>>, vector<8x144xbf16>
    %c0_30 = arith.constant 0 : index
    %c0_31 = arith.constant 0 : index
    %28 = vector.load %arg5[%c0_30, %c0_31] : memref<144x384xbf16, #tpu.memory_space<vmem>>, vector<144x384xbf16>
    %cst = arith.constant dense<0.000000e+00> : vector<8x384xf32>
    %29 = tpu.matmul %27, %28, %cst {dimension_numbers = #tpu.dot_dimension_numbers<[1], [0], [0], [1], [0, 0, 1, 1], [], []>} : vector<8x144xbf16>, vector<144x384xbf16>, vector<8x384xf32> -> vector<8x384xf32>
    %c0_32 = arith.constant 0 : index
    %c0_33 = arith.constant 0 : index
    %30 = vector.load %arg2[%c0_32, %c0_33] : memref<8x1xf32, #tpu.memory_space<vmem>>, vector<8x1xf32>
    %31 = vector.broadcast %30 : vector<8x1xf32> to vector<8x384xf32>
    %32 = arith.addf %29, %31 : vector<8x384xf32>
    %cst_34 = arith.constant 0.000000e+00 : f32
    %33 = vector.broadcast %cst_34 : f32 to vector<8x384xf32>
    %34 = arith.maximumf %32, %33 : vector<8x384xf32>
    %c0_35 = arith.constant 0 : index
    %c0_36 = arith.constant 0 : index
    %c0_37 = arith.constant 0 : index
    %35 = vector.load %arg4[%c0_35, %c0_36, %c0_37] : memref<1x8x384xf32, #tpu.memory_space<vmem>>, vector<1x8x384xf32>
    %36 = vector.shape_cast %35 : vector<1x8x384xf32> to vector<8x384xf32>
    %37 = vector.shape_cast %34 : vector<8x384xf32> to vector<1x8x384xf32>
    tpu.vector_store %arg4[%c0_35, %c0_36, %c0_37], %37 {strides = array<i32>} : memref<1x8x384xf32, #tpu.memory_space<vmem>>, vector<1x8x384xf32>,
    return
  }
  func.func @transform_0(%arg0: i32) -> (i32, i32) {
    %c0_i32 = arith.constant 0 : i32
    %c0_i32_0 = arith.constant 0 : i32
    %c0_i32_1 = arith.constant 0 : i32
    return %c0_i32, %c0_i32_0 : i32, i32
  }
  func.func @transform_1(%arg0: i32) -> (i32, i32) {
    %c0_i32 = arith.constant 0 : i32
    %c0_i32_0 = arith.constant 0 : i32
    %c0_i32_1 = arith.constant 0 : i32
    return %c0_i32, %c0_i32_0 : i32, i32
  }
  func.func @transform_2(%arg0: i32) -> (i32, i32, i32) {
    %c0_i32 = arith.constant 0 : i32
    %c0_i32_0 = arith.constant 0 : i32
    %c0_i32_1 = arith.constant 0 : i32
    return %arg0, %c0_i32, %c0_i32_0 : i32, i32, i32
  }
  func.func @transform_3(%arg0: i32) -> (i32, i32, i32) {
    %c0_i32 = arith.constant 0 : i32
    %c0_i32_0 = arith.constant 0 : i32
    %c0_i32_1 = arith.constant 0 : i32
    return %arg0, %c0_i32, %c0_i32_0 : i32, i32, i32
  }
}

</mosaic_0001>

<llo_original>
// kernel: tpu_custom_call.1
$region0: #{tpu_custom_call.1}
  #allocation0 [shape = 'u32[]', space=smem, size = 0x4, offset = 0x4, fixed_abs, tag = 'smem constant byte address 0x4 - core index']
  #allocation1 [shape = 'u32[72,128]{1,0:T(1,128)}', space=vmem, size = 0x9000, scoped, tag = 'internal scratch']
  #allocation2 [shape = 'bf16[144,384]{1,0:T(8,128)(2,1)}', space=vmem, size = 0x1b000, scoped, tag = 'scratch operand']
  %s0 = inlined_call_operand.vmem [shape: bf16[8,144], index: 0, kind: input, shape index: {}]
  %s1 = inlined_call_operand.vmem [shape: f32[8,1], index: 1, kind: input, shape index: {}]
  %s2 = inlined_call_operand.hbm [shape: bf16[2,16,512], index: 2, kind: input, shape index: {}]
  %s3 = inlined_call_operand.hbm [shape: f32[2,8,384], index: 3, kind: output, shape index: {}]
  %s4 = sld [smem:[#allocation0]]
  $region49: #{tpu_custom_call.1} parent=0
    _
  %s6 = ssub.s32 1, %s4
  %s7 = scalar_select 0, %s6, %s4
  $region1: #{tpu_custom_call.1} parent=0
    #allocation3 [shape = 'u8[32768]{0}', space=vmem, size = 0x8000, scoped, tag = 'input window, operand 2']
    #allocation4 [shape = 's32[2]{0}', space=sflag, size = 0x8, scoped, tag = 'scoped memory for tpu_custom_call.1']
    #allocation5 [shape = 's32[2]{0}', space=sflag, size = 0x8, scoped, tag = 'scoped memory for tpu_custom_call.1']
    #allocation6 [shape = 'u8[24576]{0}', space=vmem, size = 0x6000, scoped, tag = 'output window, operand 0']
    %8 = vsyncpa [#allocation4], 0
    %s9 = scalar_lea.sflag [#allocation4], 1
    %10 = vsyncpa %s9, 0
    %11 = vsyncpa [#allocation5], 0
    %s12 = scalar_lea.sflag [#allocation5], 1
    %13 = vsyncpa %s12, 0
    loop: start=0, step=1, limit=4
    $region2: #{tpu_custom_call.1} parent=1 // loop_pre_header
      _
    $region3: #{tpu_custom_call.1} parent=1 // loop_header
      %s15 = sphi 0, %s19
      %p16 = scmp.ge.s32.totalorder %s15, 4
      %s23 = sphi 0, %s23
      %s25 = sphi 0, %s23
      %s26 = sphi 0, %s25
      %s40 = sphi 0, %s26
      %s44 = sphi 0, %s44
      %s46 = sphi 0, %s44
      %s47 = sphi 0, %s46
      %s61 = sphi 0, %s47
      %s67 = sphi 0, %s69
      %s70 = sphi 0, %s67
      %s71 = sphi 0, %s70
      %s87 = sphi 0, %s71
      %s93 = sphi 0, %s95
      %s96 = sphi 0, %s93
      %s97 = sphi 0, %s96
      %s113 = sphi 0, %s97
    $region4: #{tpu_custom_call.1} parent=1 // loop_header_branch
      %18 = sbr.rel (%p16) target = $region8
    $region5: #{tpu_custom_call.1} parent=1 // loop_body
      %s20 = ssub.s32 %s15, 1
      %s21 = ssub.s32 %s15, 2
      %s22 = sadd.s32 %s15, 1
      %s24 = sadd.s32 %s23, 1
      %p27 = scmp.eq.s32.totalorder %s15, 1
      %p28 = scmp.ne.s32.totalorder %s23, %s25
      %p29 = scmp.eq.s32.totalorder %s15, 0
      %p30 = por %p28, %p29
      %p31 = scmp.ne.s32.totalorder %s23, %s25
      %p32 = scmp.eq.s32.totalorder %s20, 1
      %p33 = por %p31, %p32
      %p34 = scmp.ne.s32.totalorder %s25, %s26
      %p35 = scmp.eq.s32.totalorder %s20, 0
      %p36 = por %p34, %p35
      %p37 = scmp.ne.s32.totalorder %s25, %s26
      %p38 = scmp.eq.s32.totalorder %s21, 1
      %p39 = por %p37, %p38
      %p41 = scmp.ne.s32.totalorder %s26, %s40
      %p42 = scmp.eq.s32.totalorder %s21, 0
      %p43 = por %p41, %p42
      %s45 = sadd.s32 %s44, 1
      %p48 = scmp.eq.s32.totalorder %s15, 1
      %p49 = scmp.ne.s32.totalorder %s44, %s46
      %p50 = scmp.eq.s32.totalorder %s15, 0
      %p51 = por %p49, %p50
      %p52 = scmp.ne.s32.totalorder %s44, %s46
      %p53 = scmp.eq.s32.totalorder %s20, 1
      %p54 = por %p52, %p53
      %p55 = scmp.ne.s32.totalorder %s46, %s47
      %p56 = scmp.eq.s32.totalorder %s20, 0
      %p57 = por %p55, %p56
      %p58 = scmp.ne.s32.totalorder %s46, %s47
      %p59 = scmp.eq.s32.totalorder %s21, 1
      %p60 = por %p58, %p59
      %p62 = scmp.ne.s32.totalorder %s47, %s61
      %p63 = scmp.eq.s32.totalorder %s21, 0
      %p64 = por %p62, %p63
      %s65 = ssub.s32 %s15, %s22
      %p66 = scmp.eq.s32.totalorder %s65, 0
      %s68 = sadd.s32 %s67, 1
      %s69 = scalar_select %p66, %s67, %s68
      %p72 = pneg %p66
      %p73 = scmp.eq.s32.totalorder %s15, 1
      %p74 = por %p72, %p73
      %p75 = scmp.ne.s32.totalorder %s67, %s70
      %p76 = scmp.eq.s32.totalorder %s15, 0
      %p77 = por %p75, %p76
      %p78 = scmp.ne.s32.totalorder %s67, %s70
      %p79 = scmp.eq.s32.totalorder %s20, 1
      %p80 = por %p78, %p79
      %p81 = scmp.ne.s32.totalorder %s70, %s71
      %p82 = scmp.eq.s32.totalorder %s20, 0
      %p83 = por %p81, %p82
      %p84 = scmp.ne.s32.totalorder %s70, %s71
      %p85 = scmp.eq.s32.totalorder %s21, 1
      %p86 = por %p84, %p85
      %p88 = scmp.ne.s32.totalorder %s71, %s87
      %p89 = scmp.eq.s32.totalorder %s21, 0
      %p90 = por %p88, %p89
      %s91 = ssub.s32 %s15, %s22
      %p92 = scmp.eq.s32.totalorder %s91, 0
      %s94 = sadd.s32 %s93, 1
      %s95 = scalar_select %p92, %s93, %s94
      %p98 = pneg %p92
      %p99 = scmp.eq.s32.totalorder %s15, 1
      %p100 = por %p98, %p99
      %p101 = scmp.ne.s32.totalorder %s93, %s96
      %p102 = scmp.eq.s32.totalorder %s15, 0
      %p103 = por %p101, %p102
      %p104 = scmp.ne.s32.totalorder %s93, %s96
      %p105 = scmp.eq.s32.totalorder %s20, 1
      %p106 = por %p104, %p105
      %p107 = scmp.ne.s32.totalorder %s96, %s97
      %p108 = scmp.eq.s32.totalorder %s20, 0
      %p109 = por %p107, %p108
      %p110 = scmp.ne.s32.totalorder %s96, %s97
      %p111 = scmp.eq.s32.totalorder %s21, 1
      %p112 = por %p110, %p111
      %p114 = scmp.ne.s32.totalorder %s97, %s113
      %p115 = scmp.eq.s32.totalorder %s21, 0
      %p116 = por %p114, %p115
      %p117 = scmp.le.s32.totalorder 1, %s15
      %p118 = scmp.lt.s32.totalorder %s15, 3
      %p119 = pnand %p117, %p118
      %p120 = pneg %p119
      // Predicated region
      $region9: #{tpu_custom_call.1} parent=5 // pred_check
        _
      $region10: #{tpu_custom_call.1} parent=5 // pred_check_branch
        %122 = sbr.rel (%p119) target = $region12
      $region11: #{tpu_custom_call.1} parent=5 // pred_region
        %s123 = ssub.s32 %s15, 1
        // Predicated region
        $region13: #{tpu_custom_call.1} parent=11 // pred_check
          %p124 = pneg %p36
        $region14: #{tpu_custom_call.1} parent=11 // pred_check_branch
          %126 = sbr.rel (%p124) target = $region16
        $region15: #{tpu_custom_call.1} parent=11 // pred_region
          _
        $region16: #{tpu_custom_call.1} parent=11 // pred_fallthru
          _
        // Predicated region
        $region17: #{tpu_custom_call.1} parent=11 // pred_check
          %p127 = pneg %p57
        $region18: #{tpu_custom_call.1} parent=11 // pred_check_branch
          %129 = sbr.rel (%p127) target = $region20
        $region19: #{tpu_custom_call.1} parent=11 // pred_region
          _
        $region20: #{tpu_custom_call.1} parent=11 // pred_fallthru
          _
      $region12: #{tpu_custom_call.1} parent=5 // pred_fallthru
        _
      %p130 = scmp.lt.s32.totalorder %s15, 2
      // Predicated region
      $region21: #{tpu_custom_call.1} parent=5 // pred_check
        %p131 = pneg %p130
      $region22: #{tpu_custom_call.1} parent=5 // pred_check_branch
        %133 = sbr.rel (%p131) target = $region24
      $region23: #{tpu_custom_call.1} parent=5 // pred_region
        // Predicated region
        $region25: #{tpu_custom_call.1} parent=23 // pred_check
          %p134 = pneg %p77
        $region26: #{tpu_custom_call.1} parent=23 // pred_check_branch
          %136 = sbr.rel (%p134) target = $region28
        $region27: #{tpu_custom_call.1} parent=23 // pred_region
          %s137 = sand.u32 %s67, 1
          %s138 = scalar_lea.sflag [#allocation4], %s137
          %s139 = sand.u32 %s67, 1
          %s140 = smul.addr %s139, 32
          %s141 = scalar_lea.vmem [#allocation3], %s140
          %143 = vsyncadd %s138, 0
          %s144 = smul.addr %s15, 8
          %s145 = smul.addr %s144, 4
          %s146 = scalar_lea.hbm %s2, %s145
          %s147 = sshll.u32 %s146, 4
          %s148 = int_to_ptr.hbm [resolvable:$true] %s147
          %s149 = sshll.u32 %s141, 4
          %s150 = int_to_ptr.vmem [resolvable:$true] %s149
          %155 = dma.hbm_to_vmem [thread:$0]  %s148, 512, %s150, %s138, 256, 256, 16
        $region28: #{tpu_custom_call.1} parent=23 // pred_fallthru
          _
      $region24: #{tpu_custom_call.1} parent=5 // pred_fallthru
        _
      %p156 = scmp.le.s32.totalorder 1, %s15
      %p157 = scmp.lt.s32.totalorder %s15, 3
      %p158 = pnand %p156, %p157
      %p159 = pneg %p158
      // Predicated region
      $region29: #{tpu_custom_call.1} parent=5 // pred_check
        _
      $region30: #{tpu_custom_call.1} parent=5 // pred_check_branch
        %161 = sbr.rel (%p158) target = $region32
      $region31: #{tpu_custom_call.1} parent=5 // pred_region
        %s162 = ssub.s32 %s15, 1
        %s163 = sand.u32 %s70, 1
        %s164 = scalar_lea.sflag [#allocation4], %s163
        %s165 = sand.u32 %s70, 1
        %s166 = smul.addr %s165, 32
        %s167 = scalar_lea.vmem [#allocation3], %s166
        // Predicated region
        $region33: #{tpu_custom_call.1} parent=31 // pred_check
          %p168 = pneg %p83
        $region34: #{tpu_custom_call.1} parent=31 // pred_check_branch
          %170 = sbr.rel (%p168) target = $region36
        $region35: #{tpu_custom_call.1} parent=31 // pred_region
          %172 = dma.done %s164, 512
        $region36: #{tpu_custom_call.1} parent=31 // pred_fallthru
          _
        %p173 = pneg %p36
        %p174 = pneg %p33
        %p175 = pneg %p57
        %p176 = pneg %p54
        %s177 = sand.u32 %s70, 1
        %s178 = scalar_lea.sflag [#allocation4], %s177
        %s179 = sand.u32 %s70, 1
        %s180 = smul.addr %s179, 32
        %s181 = scalar_lea.vmem [#allocation3], %s180
        %p182 = pneg %p83
        %p183 = pneg %p80
        %p184 = pneg %p109
        %p185 = pneg %p106
        %s186 = sand.u32 %s96, 1
        %s187 = scalar_lea.sflag [#allocation5], %s186
        %s188 = sand.u32 %s96, 1
        %s189 = smul.addr %s188, 24
        %s190 = scalar_lea.vmem [#allocation6], %s189
        %v192 = vld [vmem:[%s167] sm:$0xff]
        %v193 = vld [vmem:[%s167 + $0x8] sm:$0xf]
        %v194 = vld [vmem:[%s167 + $0x10] sm:$0xff]
        %v195 = vld [vmem:[%s167 + $0x18] sm:$0xf]
        %196 = vst [vmem:[#allocation2] sm:$0xff] %v192
        %197 = vst [vmem:[#allocation2 + $0x8] sm:$0xf] %v193
        %198 = vst [vmem:[#allocation2 + $0xc] sm:$0xff] %v194
        %199 = vst [vmem:[#allocation2 + $0x14] sm:$0xf] %v195
        %v200 = vld [vmem:[%s167] sm:$0xff]
        %v201 = vld [vmem:[%s167 + $0x8] sm:$0xff]
        %v202 = vld [vmem:[%s167 + $0x10] sm:$0xff]
        %v203 = vld [vmem:[%s167 + $0x18] sm:$0xff]
        %208 = vrot.lane.b32.xlu0 %v200, 127
        %v209 = vpop.permute.xlu0 %208
        %210 = vrot.lane.b32.xlu0 %v201, 127
        %v211 = vpop.permute.xlu0 %210
        %212 = vrot.lane.b32.xlu0 %v202, 127
        %v213 = vpop.permute.xlu0 %212
        %214 = vrot.lane.b32.xlu0 %v203, 127
        %v215 = vpop.permute.xlu0 %214
        %v216 = vrot.slane %v209, 4
        %v217 = vrot.slane %v211, 4
        %v218 = vrot.slane %v213, 4
        %v219 = vrot.slane %v215, 4
        %vm220 = vcmask 1043456
        %v221 = vsel %vm220, %v216, %v217
        %vm222 = vcmask 1039360
        %v223 = vsel %vm222, %v209, %v221
        %v224 = vsel %vm222, %v211, %v217
        %v225 = vsel %vm220, %v218, %v219
        %v226 = vsel %vm222, %v213, %v225
        %v227 = vsel %vm222, %v215, %v219
        %232 = vst [vmem:[#allocation2 + $0x18] sm:$0xff] %v223
        %233 = vst [vmem:[#allocation2 + $0x20] sm:$0xf] %v224
        %234 = vst [vmem:[#allocation2 + $0x24] sm:$0xff] %v226
        %235 = vst [vmem:[#allocation2 + $0x2c] sm:$0xf] %v227
        %v236 = vld [vmem:[%s167] sm:$0xff]
        %v237 = vld [vmem:[%s167 + $0x8] sm:$0xff]
        %v238 = vld [vmem:[%s167 + $0x10] sm:$0xff]
        %v239 = vld [vmem:[%s167 + $0x18] sm:$0xff]
        %244 = vrot.lane.b32.xlu0 %v236, 126
        %v245 = vpop.permute.xlu0 %244
        %246 = vrot.lane.b32.xlu0 %v237, 126
        %v247 = vpop.permute.xlu0 %246
        %248 = vrot.lane.b32.xlu0 %v238, 126
        %v249 = vpop.permute.xlu0 %248
        %250 = vrot.lane.b32.xlu0 %v239, 126
        %v251 = vpop.permute.xlu0 %250
        %v252 = vrot.slane %v245, 4
        %v253 = vrot.slane %v247, 4
        %v254 = vrot.slane %v249, 4
        %v255 = vrot.slane %v251, 4
        %v256 = vsel %vm220, %v252, %v253
        %vm257 = vcmask 1031168
        %v258 = vsel %vm257, %v245, %v256
        %v259 = vsel %vm257, %v247, %v253
        %v260 = vsel %vm220, %v254, %v255
        %v261 = vsel %vm257, %v249, %v260
        %v262 = vsel %vm257, %v251, %v255
        %267 = vst [vmem:[#allocation2 + $0x30] sm:$0xff] %v258
        %268 = vst [vmem:[#allocation2 + $0x38] sm:$0xf] %v259
        %269 = vst [vmem:[#allocation2 + $0x3c] sm:$0xff] %v261
        %270 = vst [vmem:[#allocation2 + $0x44] sm:$0xf] %v262
        %v271 = vld [vmem:[%s167] sm:$0xff]
        %v272 = vld [vmem:[%s167 + $0x8] sm:$0xff]
        %v273 = vld [vmem:[%s167 + $0x10] sm:$0xff]
        %v274 = vld [vmem:[%s167 + $0x18] sm:$0xff]
        %279 = vrot.lane.b32.xlu0 %v271, 110
        %v280 = vpop.permute.xlu0 %279
        %281 = vrot.lane.b32.xlu0 %v272, 110
        %v282 = vpop.permute.xlu0 %281
        %283 = vrot.lane.b32.xlu0 %v273, 110
        %v284 = vpop.permute.xlu0 %283
        %285 = vrot.lane.b32.xlu0 %v274, 110
        %v286 = vpop.permute.xlu0 %285
        %v287 = vrot.slane %v280, 4
        %v288 = vrot.slane %v282, 4
        %v289 = vrot.slane %v284, 4
        %v290 = vrot.slane %v286, 4
        %v291 = vsel %vm220, %v287, %v288
        %vm292 = vcmask 900096
        %v293 = vsel %vm292, %v280, %v291
        %v294 = vsel %vm292, %v282, %v288
        %v295 = vsel %vm220, %v289, %v290
        %v296 = vsel %vm292, %v284, %v295
        %v297 = vsel %vm292, %v286, %v290
        %302 = vst [vmem:[#allocation2 + $0x48] sm:$0xff] %v293
        %303 = vst [vmem:[#allocation2 + $0x50] sm:$0xf] %v294
        %304 = vst [vmem:[#allocation2 + $0x54] sm:$0xff] %v296
        %305 = vst [vmem:[#allocation2 + $0x5c] sm:$0xf] %v297
        %v306 = vld [vmem:[%s167] sm:$0xff]
        %v307 = vld [vmem:[%s167 + $0x8] sm:$0xff]
        %v308 = vld [vmem:[%s167 + $0x10] sm:$0xff]
        %v309 = vld [vmem:[%s167 + $0x18] sm:$0xff]
        %314 = vrot.lane.b32.xlu0 %v306, 109
        %v315 = vpop.permute.xlu0 %314
        %316 = vrot.lane.b32.xlu0 %v307, 109
        %v317 = vpop.permute.xlu0 %316
        %318 = vrot.lane.b32.xlu0 %v308, 109
        %v319 = vpop.permute.xlu0 %318
        %320 = vrot.lane.b32.xlu0 %v309, 109
        %v321 = vpop.permute.xlu0 %320
        %v322 = vrot.slane %v315, 4
        %v323 = vrot.slane %v317, 4
        %v324 = vrot.slane %v319, 4
        %v325 = vrot.slane %v321, 4
        %v326 = vsel %vm220, %v322, %v323
        %vm327 = vcmask 891904
        %v328 = vsel %vm327, %v315, %v326
        %v329 = vsel %vm327, %v317, %v323
        %v330 = vsel %vm220, %v324, %v325
        %v331 = vsel %vm327, %v319, %v330
        %v332 = vsel %vm327, %v321, %v325
        %337 = vst [vmem:[#allocation2 + $0x60] sm:$0xff] %v328
        %338 = vst [vmem:[#allocation2 + $0x68] sm:$0xf] %v329
        %339 = vst [vmem:[#allocation2 + $0x6c] sm:$0xff] %v331
        %340 = vst [vmem:[#allocation2 + $0x74] sm:$0xf] %v332
        %v341 = vld [vmem:[%s167] sm:$0xff]
        %v342 = vld [vmem:[%s167 + $0x8] sm:$0xff]
        %v343 = vld [vmem:[%s167 + $0x10] sm:$0xff]
        %v344 = vld [vmem:[%s167 + $0x18] sm:$0xff]
        %349 = vrot.lane.b32.xlu0 %v341, 108
        %v350 = vpop.permute.xlu0 %349
        %351 = vrot.lane.b32.xlu0 %v342, 108
        %v352 = vpop.permute.xlu0 %351
        %353 = vrot.lane.b32.xlu0 %v343, 108
        %v354 = vpop.permute.xlu0 %353
        %355 = vrot.lane.b32.xlu0 %v344, 108
        %v356 = vpop.permute.xlu0 %355
        %v357 = vrot.slane %v350, 4
        %v358 = vrot.slane %v352, 4
        %v359 = vrot.slane %v354, 4
        %v360 = vrot.slane %v356, 4
        %v361 = vsel %vm220, %v357, %v358
        %vm362 = vcmask 883712
        %v363 = vsel %vm362, %v350, %v361
        %v364 = vsel %vm362, %v352, %v358
        %v365 = vsel %vm220, %v359, %v360
        %v366 = vsel %vm362, %v354, %v365
        %v367 = vsel %vm362, %v356, %v360
        %372 = vst [vmem:[#allocation2 + $0x78] sm:$0xff] %v363
        %373 = vst [vmem:[#allocation2 + $0x80] sm:$0xf] %v364
        %374 = vst [vmem:[#allocation2 + $0x84] sm:$0xff] %v366
        %375 = vst [vmem:[#allocation2 + $0x8c] sm:$0xf] %v367
        %v376 = vld [vmem:[%s167] sm:$0xff]
        %v377 = vld [vmem:[%s167 + $0x8] sm:$0xff]
        %v378 = vld [vmem:[%s167 + $0x10] sm:$0xff]
        %v379 = vld [vmem:[%s167 + $0x18] sm:$0xff]
        %384 = vrot.lane.b32.xlu0 %v376, 92
        %v385 = vpop.permute.xlu0 %384
        %386 = vrot.lane.b32.xlu0 %v377, 92
        %v387 = vpop.permute.xlu0 %386
        %388 = vrot.lane.b32.xlu0 %v378, 92
        %v389 = vpop.permute.xlu0 %388
        %390 = vrot.lane.b32.xlu0 %v379, 92
        %v391 = vpop.permute.xlu0 %390
        %v392 = vrot.slane %v385, 4
        %v393 = vrot.slane %v387, 4
        %v394 = vrot.slane %v389, 4
        %v395 = vrot.slane %v391, 4
        %v396 = vsel %vm220, %v392, %v393
        %vm397 = vcmask 752640
        %v398 = vsel %vm397, %v385, %v396
        %v399 = vsel %vm397, %v387, %v393
        %v400 = vsel %vm220, %v394, %v395
        %v401 = vsel %vm397, %v389, %v400
        %v402 = vsel %vm397, %v391, %v395
        %407 = vst [vmem:[#allocation2 + $0x90] sm:$0xff] %v398
        %408 = vst [vmem:[#allocation2 + $0x98] sm:$0xf] %v399
        %409 = vst [vmem:[#allocation2 + $0x9c] sm:$0xff] %v401
        %410 = vst [vmem:[#allocation2 + $0xa4] sm:$0xf] %v402
        %v411 = vld [vmem:[%s167] sm:$0xff]
        %v412 = vld [vmem:[%s167 + $0x8] sm:$0xff]
        %v413 = vld [vmem:[%s167 + $0x10] sm:$0xff]
        %v414 = vld [vmem:[%s167 + $0x18] sm:$0xff]
        %419 = vrot.lane.b32.xlu0 %v411, 91
        %v420 = vpop.permute.xlu0 %419
        %421 = vrot.lane.b32.xlu0 %v412, 91
        %v422 = vpop.permute.xlu0 %421
        %423 = vrot.lane.b32.xlu0 %v413, 91
        %v424 = vpop.permute.xlu0 %423
        %425 = vrot.lane.b32.xlu0 %v414, 91
        %v426 = vpop.permute.xlu0 %425
        %v427 = vrot.slane %v420, 4
        %v428 = vrot.slane %v422, 4
        %v429 = vrot.slane %v424, 4
        %v430 = vrot.slane %v426, 4
        %v431 = vsel %vm220, %v427, %v428
        %vm432 = vcmask 744448
        %v433 = vsel %vm432, %v420, %v431
        %v434 = vsel %vm432, %v422, %v428
        %v435 = vsel %vm220, %v429, %v430
        %v436 = vsel %vm432, %v424, %v435
        %v437 = vsel %vm432, %v426, %v430
        %442 = vst [vmem:[#allocation2 + $0xa8] sm:$0xff] %v433
        %443 = vst [vmem:[#allocation2 + $0xb0] sm:$0xf] %v434
        %444 = vst [vmem:[#allocation2 + $0xb4] sm:$0xff] %v436
        %445 = vst [vmem:[#allocation2 + $0xbc] sm:$0xf] %v437
        %v446 = vld [vmem:[%s167] sm:$0xff]
        %v447 = vld [vmem:[%s167 + $0x8] sm:$0xff]
        %v448 = vld [vmem:[%s167 + $0x10] sm:$0xff]
        %v449 = vld [vmem:[%s167 + $0x18] sm:$0xff]
        %454 = vrot.lane.b32.xlu0 %v446, 90
        %v455 = vpop.permute.xlu0 %454
        %456 = vrot.lane.b32.xlu0 %v447, 90
        %v457 = vpop.permute.xlu0 %456
        %458 = vrot.lane.b32.xlu0 %v448, 90
        %v459 = vpop.permute.xlu0 %458
        %460 = vrot.lane.b32.xlu0 %v449, 90
        %v461 = vpop.permute.xlu0 %460
        %v462 = vrot.slane %v455, 4
        %v463 = vrot.slane %v457, 4
        %v464 = vrot.slane %v459, 4
        %v465 = vrot.slane %v461, 4
        %v466 = vsel %vm220, %v462, %v463
        %vm467 = vcmask 736256
        %v468 = vsel %vm467, %v455, %v466
        %v469 = vsel %vm467, %v457, %v463
        %v470 = vsel %vm220, %v464, %v465
        %v471 = vsel %vm467, %v459, %v470
        %v472 = vsel %vm467, %v461, %v465
        %477 = vst [vmem:[#allocation2 + $0xc0] sm:$0xff] %v468
        %478 = vst [vmem:[#allocation2 + $0xc8] sm:$0xf] %v469
        %479 = vst [vmem:[#allocation2 + $0xcc] sm:$0xff] %v471
        %480 = vst [vmem:[#allocation2 + $0xd4] sm:$0xf] %v472
        %v481 = vld [vmem:[%s0] sm:$0xff]
        %v482 = vld [vmem:[#allocation2] sm:$0xff]
        %v483 = vld [vmem:[#allocation2 + $0x8] sm:$0xf]
        %v484 = vld [vmem:[#allocation2 + $0xc] sm:$0xff]
        %v485 = vld [vmem:[#allocation2 + $0x14] sm:$0xf]
        %v486 = vld [vmem:[#allocation2 + $0x18] sm:$0xff]
        %v487 = vld [vmem:[#allocation2 + $0x20] sm:$0xf]
        %v488 = vld [vmem:[#allocation2 + $0x24] sm:$0xff]
        %v489 = vld [vmem:[#allocation2 + $0x2c] sm:$0xf]
        %v490 = vld [vmem:[#allocation2 + $0x30] sm:$0xff]
        %v491 = vld [vmem:[#allocation2 + $0x38] sm:$0xf]
        %v492 = vld [vmem:[#allocation2 + $0x3c] sm:$0xff]
        %v493 = vld [vmem:[#allocation2 + $0x44] sm:$0xf]
        %v494 = vld [vmem:[#allocation2 + $0x48] sm:$0xff]
        %v495 = vld [vmem:[#allocation2 + $0x50] sm:$0xf]
        %v496 = vld [vmem:[#allocation2 + $0x54] sm:$0xff]
        %v497 = vld [vmem:[#allocation2 + $0x5c] sm:$0xf]
        %v498 = vld [vmem:[#allocation2 + $0x60] sm:$0xff]
        %v499 = vld [vmem:[#allocation2 + $0x68] sm:$0xf]
        %v500 = vld [vmem:[#allocation2 + $0x6c] sm:$0xff]
        %v501 = vld [vmem:[#allocation2 + $0x74] sm:$0xf]
        %v502 = vld [vmem:[#allocation2 + $0x78] sm:$0xff]
        %v503 = vld [vmem:[#allocation2 + $0x80] sm:$0xf]
        %v504 = vld [vmem:[#allocation2 + $0x84] sm:$0xff]
        %v505 = vld [vmem:[#allocation2 + $0x8c] sm:$0xf]
        %v506 = vld [vmem:[#allocation2 + $0x90] sm:$0xff]
        %v507 = vld [vmem:[#allocation2 + $0x98] sm:$0xf]
        %v508 = vld [vmem:[#allocation2 + $0x9c] sm:$0xff]
        %v509 = vld [vmem:[#allocation2 + $0xa4] sm:$0xf]
        %v510 = vld [vmem:[#allocation2 + $0xa8] sm:$0xff]
        %v511 = vld [vmem:[#allocation2 + $0xb0] sm:$0xf]
        %v512 = vld [vmem:[#allocation2 + $0xb4] sm:$0xff]
        %v513 = vld [vmem:[#allocation2 + $0xbc] sm:$0xf]
        %v514 = vld [vmem:[#allocation2 + $0xc0] sm:$0xff]
        %v515 = vld [vmem:[#allocation2 + $0xc8] sm:$0xf]
        %v516 = vld [vmem:[#allocation2 + $0xcc] sm:$0xff]
        %v517 = vld [vmem:[#allocation2 + $0xd4] sm:$0xf]
        %v518 = vld [vmem:[%s1] sm:$0xff]
        %520 = vset.pattern.permute.xlu0 0
        %521 = vperm.xlu0 %520, %v518
        %v522 = vpop.permute.xlu0 %521
        %v525 = vunpack.c.l.b16 %v481
        %v526 = vunpack.c.h.b16 %v481
        %v527 = vpack.c.b16 %v525, %v525
        %v528 = vpack.c.b16 %v526, %v526
        %v566 = vunpack.c.l.b16 %v482
        %v567 = vunpack.c.h.b16 %v482
        %v568 = vunpack.c.l.b16 %v483
        %v569 = vunpack.c.l.b16 %v484
        %v570 = vunpack.c.h.b16 %v484
        %v571 = vunpack.c.l.b16 %v485
        %v572 = vunpack.c.l.b16 %v486
        %v573 = vunpack.c.h.b16 %v486
        %v574 = vunpack.c.l.b16 %v487
        %v575 = vunpack.c.l.b16 %v488
        %v576 = vunpack.c.h.b16 %v488
        %v577 = vunpack.c.l.b16 %v489
        %v578 = vunpack.c.l.b16 %v490
        %v579 = vunpack.c.h.b16 %v490
        %v580 = vunpack.c.l.b16 %v491
        %v581 = vunpack.c.l.b16 %v492
        %v582 = vunpack.c.h.b16 %v492
        %v583 = vunpack.c.l.b16 %v493
        %v584 = vunpack.c.l.b16 %v494
        %v585 = vunpack.c.h.b16 %v494
        %v586 = vunpack.c.l.b16 %v495
        %v587 = vunpack.c.l.b16 %v496
        %v588 = vunpack.c.h.b16 %v496
        %v589 = vunpack.c.l.b16 %v497
        %v590 = vunpack.c.l.b16 %v498
        %v591 = vunpack.c.h.b16 %v498
        %v592 = vunpack.c.l.b16 %v499
        %v593 = vunpack.c.l.b16 %v500
        %v594 = vunpack.c.h.b16 %v500
        %v595 = vunpack.c.l.b16 %v501
        %v596 = vunpack.c.l.b16 %v502
        %v597 = vunpack.c.h.b16 %v502
        %v598 = vunpack.c.l.b16 %v503
        %v599 = vunpack.c.l.b16 %v504
        %v600 = vunpack.c.h.b16 %v504
        %v601 = vunpack.c.l.b16 %v505
        %v602 = vunpack.c.l.b16 %v506
        %v603 = vunpack.c.h.b16 %v506
        %v604 = vunpack.c.l.b16 %v507
        %v605 = vunpack.c.l.b16 %v508
        %v606 = vunpack.c.h.b16 %v508
        %v607 = vunpack.c.l.b16 %v509
        %v608 = vunpack.c.l.b16 %v510
        %v609 = vunpack.c.h.b16 %v510
        %v610 = vunpack.c.l.b16 %v511
        %v611 = vunpack.c.l.b16 %v512
        %v612 = vunpack.c.h.b16 %v512
        %v613 = vunpack.c.l.b16 %v513
        %v614 = vunpack.c.l.b16 %v514
        %v615 = vunpack.c.h.b16 %v514
        %v616 = vunpack.c.l.b16 %v515
        %v617 = vunpack.c.l.b16 %v516
        %v618 = vunpack.c.h.b16 %v516
        %v619 = vunpack.c.l.b16 %v517
        %v620 = vpack.c.b16 %v569, %v566
        %v621 = vpack.c.b16 %v570, %v567
        %v622 = vpack.c.b16 %v571, %v568
        %v623 = vpack.c.b16 %v575, %v572
        %v624 = vpack.c.b16 %v576, %v573
        %v625 = vpack.c.b16 %v577, %v574
        %v626 = vpack.c.b16 %v581, %v578
        %v627 = vpack.c.b16 %v582, %v579
        %v628 = vpack.c.b16 %v583, %v580
        %v629 = vpack.c.b16 %v587, %v584
        %v630 = vpack.c.b16 %v588, %v585
        %v631 = vpack.c.b16 %v589, %v586
        %v632 = vpack.c.b16 %v593, %v590
        %v633 = vpack.c.b16 %v594, %v591
        %v634 = vpack.c.b16 %v595, %v592
        %v635 = vpack.c.b16 %v599, %v596
        %v636 = vpack.c.b16 %v600, %v597
        %v637 = vpack.c.b16 %v601, %v598
        %v638 = vpack.c.b16 %v605, %v602
        %v639 = vpack.c.b16 %v606, %v603
        %v640 = vpack.c.b16 %v607, %v604
        %v641 = vpack.c.b16 %v611, %v608
        %v642 = vpack.c.b16 %v612, %v609
        %v643 = vpack.c.b16 %v613, %v610
        %v644 = vpack.c.b16 %v617, %v614
        %v645 = vpack.c.b16 %v618, %v615
        %v646 = vpack.c.b16 %v619, %v616
        %vm674 = vcmask 130048
        %v676 = vsel %vm674, %v528, 0
        %678 = vmatpush.bf16.msra.mxu0 %v641
        %679 = vmatpush.bf16.msra.mxu0 %v638
        %680 = vmatpush.bf16.msra.mxu0 %v635
        %681 = vmatpush.bf16.msra.mxu0 %v632
        %682 = vmatpush.bf16.msra.mxu0 %v629
        %683 = vmatpush.bf16.msra.mxu0 %v626
        %684 = vmatpush.bf16.msra.mxu0 %v623
        %685 = vmatpush.bf16.msra.mxu0 %v620
        %686 = vmatmul.bf16.gmra.mxu0 %v527
        %v687 = vpop.f32.mrf.mxu0
        %v688 = vadd.f32 %v522, %v687
        %v689 = vpop.f32.mrf.mxu0
        %690 = vdwg.mxu0
        %691 = vmatpush.bf16.msra.mxu0 0
        %692 = vmatpush.bf16.msra.mxu0 0
        %693 = vmatpush.bf16.msra.mxu0 0
        %694 = vmatpush.bf16.msra.mxu0 0
        %695 = vmatpush.bf16.msra.mxu0 0
        %696 = vmatpush.bf16.msra.mxu0 0
        %697 = vmatpush.bf16.msra.mxu0 0
        %698 = vmatpush.bf16.msra.mxu0 %v644
        %699 = vmatmul.bf16.gmra.mxu0 %v676
        %v700 = vpop.f32.mrf.mxu0
        %v701 = vadd.f32 %v688, %v700
        %v702 = vpop.f32.mrf.mxu0
        %703 = vdwg.mxu0
        %704 = vmatpush.bf16.msra.mxu0 %v642
        %705 = vmatpush.bf16.msra.mxu0 %v639
        %706 = vmatpush.bf16.msra.mxu0 %v636
        %707 = vmatpush.bf16.msra.mxu0 %v633
        %708 = vmatpush.bf16.msra.mxu0 %v630
        %709 = vmatpush.bf16.msra.mxu0 %v627
        %710 = vmatpush.bf16.msra.mxu0 %v624
        %711 = vmatpush.bf16.msra.mxu0 %v621
        %712 = vmatmul.bf16.gmra.mxu0 %v527
        %v713 = vpop.f32.mrf.mxu0
        %v714 = vadd.f32 %v522, %v713
        %v715 = vpop.f32.mrf.mxu0
        %716 = vdwg.mxu0
        %717 = vmatpush.bf16.msra.mxu0 0
        %718 = vmatpush.bf16.msra.mxu0 0
        %719 = vmatpush.bf16.msra.mxu0 0
        %720 = vmatpush.bf16.msra.mxu0 0
        %721 = vmatpush.bf16.msra.mxu0 0
        %722 = vmatpush.bf16.msra.mxu0 0
        %723 = vmatpush.bf16.msra.mxu0 0
        %724 = vmatpush.bf16.msra.mxu0 %v645
        %725 = vmatmul.bf16.gmra.mxu0 %v676
        %v726 = vpop.f32.mrf.mxu0
        %v727 = vadd.f32 %v714, %v726
        %v728 = vpop.f32.mrf.mxu0
        %729 = vdwg.mxu0
        %730 = vmatpush.bf16.msra.mxu0 %v643
        %731 = vmatpush.bf16.msra.mxu0 %v640
        %732 = vmatpush.bf16.msra.mxu0 %v637
        %733 = vmatpush.bf16.msra.mxu0 %v634
        %734 = vmatpush.bf16.msra.mxu0 %v631
        %735 = vmatpush.bf16.msra.mxu0 %v628
        %736 = vmatpush.bf16.msra.mxu0 %v625
        %737 = vmatpush.bf16.msra.mxu0 %v622
        %738 = vmatmul.bf16.gmra.mxu0 %v527
        %v739 = vpop.f32.mrf.mxu0
        %v740 = vadd.f32 %v522, %v739
        %v741 = vpop.f32.mrf.mxu0
        %742 = vdwg.mxu0
        %743 = vmatpush.bf16.msra.mxu0 0
        %744 = vmatpush.bf16.msra.mxu0 0
        %745 = vmatpush.bf16.msra.mxu0 0
        %746 = vmatpush.bf16.msra.mxu0 0
        %747 = vmatpush.bf16.msra.mxu0 0
        %748 = vmatpush.bf16.msra.mxu0 0
        %749 = vmatpush.bf16.msra.mxu0 0
        %750 = vmatpush.bf16.msra.mxu0 %v646
        %751 = vmatmul.bf16.gmra.mxu0 %v676
        %v752 = vpop.f32.mrf.mxu0
        %v753 = vadd.f32 %v740, %v752
        %v754 = vpop.f32.mrf.mxu0
        %755 = vdwg.mxu0
        %v756 = vmax.f32 %v701, 0.0
        %v757 = vmax.f32 %v727, 0.0
        %v758 = vmax.f32 %v753, 0.0
        %759 = vst [vmem:[%s190] sm:$0xff] %v756
        %760 = vst [vmem:[%s190 + $0x8] sm:$0xff] %v757
        %761 = vst [vmem:[%s190 + $0x10] sm:$0xff] %v758
        %s762 = sand.u32 %s96, 1
        %s763 = scalar_lea.sflag [#allocation5], %s762
        %s764 = sand.u32 %s96, 1
        %s765 = smul.addr %s764, 24
        %s766 = scalar_lea.vmem [#allocation6], %s765
        // Predicated region
        $region37: #{tpu_custom_call.1} parent=31 // pred_check
          %p767 = pneg %p106
        $region38: #{tpu_custom_call.1} parent=31 // pred_check_branch
          %769 = sbr.rel (%p767) target = $region40
        $region39: #{tpu_custom_call.1} parent=31 // pred_region
          %771 = vsyncadd %s763, 0
          %s772 = smul.addr %s20, 3
          %s773 = smul.addr %s772, 8
          %s774 = scalar_lea.hbm %s3, %s773
          %s776 = sshll.u32 %s766, 4
          %s777 = int_to_ptr.vmem [resolvable:$true] %s776
          %s778 = sshll.u32 %s774, 4
          %s779 = int_to_ptr.hbm [resolvable:$true] %s778
          %781 = dma.vmem_to_hbm [thread:$0]  %s777, 384, %s779, %s763
        $region40: #{tpu_custom_call.1} parent=31 // pred_fallthru
          _
      $region32: #{tpu_custom_call.1} parent=5 // pred_fallthru
        _
      %p782 = scmp.le.s32.totalorder 2, %s15
      // Predicated region
      $region41: #{tpu_custom_call.1} parent=5 // pred_check
        %p783 = pneg %p782
      $region42: #{tpu_custom_call.1} parent=5 // pred_check_branch
        %785 = sbr.rel (%p783) target = $region44
      $region43: #{tpu_custom_call.1} parent=5 // pred_region
        %s786 = ssub.s32 %s15, 2
        // Predicated region
        $region45: #{tpu_custom_call.1} parent=43 // pred_check
          %p787 = pneg %p112
        $region46: #{tpu_custom_call.1} parent=43 // pred_check_branch
          %789 = sbr.rel (%p787) target = $region48
        $region47: #{tpu_custom_call.1} parent=43 // pred_region
          %s790 = sand.u32 %s97, 1
          %s791 = scalar_lea.sflag [#allocation5], %s790
          %s792 = sand.u32 %s97, 1
          %s793 = smul.addr %s792, 24
          %s794 = scalar_lea.vmem [#allocation6], %s793
          %796 = dma.done %s791, 384
        $region48: #{tpu_custom_call.1} parent=43 // pred_fallthru
          _
      $region44: #{tpu_custom_call.1} parent=5 // pred_fallthru
        _
    $region6: #{tpu_custom_call.1} parent=1 // loop_footer
      %s19 = sadd.s32 1, %s15
    $region7: #{tpu_custom_call.1} parent=1 // loop_footer_branch
      %14 = sbr.rel target = $region3
    $region8: #{tpu_custom_call.1} parent=1 // loop_exit
      _
    %797 = vsyncpa [#allocation4], 1
    %s798 = scalar_lea.sflag [#allocation4], 1
    %799 = vsyncpa %s798, 1
    %800 = vsyncpa [#allocation5], 1
    %s801 = scalar_lea.sflag [#allocation5], 1
    %802 = vsyncpa %s801, 1

</llo_original>
